<compile_context>
chip_gen: v6e
topology: v6e:2x2x1
jax: 0.10.0
libtpu: 0.0.40
codegen_flags: <defaults>
</compile_context>

<pallas_src>
import jax
import jax.numpy as jnp
from jax.experimental import pallas as pl
from jax.experimental.pallas import tpu as pltpu

LANE = 128


def _round_up(x, m):
    return (x + m - 1) // m * m


def _choose_b_tile(n, max_tile=128):
    """Batch tile: big enough to amortize per-step grid overhead, multiple of 8
    (sublane-aligned output blocks) when the grid has >1 step, and >=2 grid
    steps whenever possible so both v7x TensorCores get work."""
    if n < 16:
        return n                         # single grid step; too small to split
    t = min(max_tile, n // 2)            # >= 2 grid steps
    return max(8, (t // 8) * 8)          # sublane-aligned


# ---------------------------------------------------------------------------
# Fused kernel: (composed) conv as one im2col matmul + ReLU + length-sum + FC,
# one batch TILE per grid step.  All intermediates live in VMEM / vregs.
# ---------------------------------------------------------------------------
def _fused_kernel(cols_ref, w2_ref, b_ref, wfc_ref, bfc_ref, o_ref):
    # cols_ref: (B_TILE, L_out, K_eff*C_in)  im2col'd input tile
    # w2_ref:   (K_eff*C_in, C_pad)          composed conv weight (im2col layout)
    # b_ref:    (1, C_pad)                   composed conv bias
    # wfc_ref:  (C_pad, classes_pad)         FC weight (transposed, lane-padded)
    # bfc_ref:  (1, classes_pad)             FC bias (lane-padded)
    # o_ref:    (B_TILE, classes_pad)
    b_tile, l_out, kc = cols_ref.shape
    cols = cols_ref[...].reshape(b_tile * l_out, kc).astype(jnp.float32)

    # Whole conv stack as ONE MXU matmul (weights pre-composed on the host).
    y = jnp.dot(cols, w2_ref[...], preferred_element_type=jnp.float32) + b_ref[...]
    y = jnp.maximum(y, 0.0)                                    # ReLU (VPU, f32)

    # Sum over the length dimension per batch element (sublane-group reduce).
    s = jnp.sum(y.reshape(b_tile, l_out, -1), axis=1)          # (B_TILE, C_pad)

    # FC as a real MXU matmul -> dense (B_TILE, classes_pad) output slab.
    out = jnp.dot(s, wfc_ref[...], preferred_element_type=jnp.float32) + bfc_ref[...]
    o_ref[...] = out.astype(o_ref.dtype)


# ---------------------------------------------------------------------------
# Forward wrapper: one pallas_call for the whole network.
# ---------------------------------------------------------------------------
def my_model_forward(prep, x, xxx=None, *, max_b_tile=128):
    # `xxx` is unused, exactly as in the PyTorch forward.
    n, c_in, length = x.shape
    k_eff = prep["k_eff"]
    l_out = length - k_eff + 1
    kc = k_eff * c_in
    classes = prep["classes"]
    c_pad = prep["w2"].shape[1]
    classes_pad = prep["fc_w_pad"].shape[1]

    b_tile = _choose_b_tile(n, max_b_tile)
    n_pad = _round_up(n, b_tile)
    grid = n_pad // b_tile

    x_p = x if n_pad == n else jnp.pad(x, ((0, n_pad - n), (0, 0), (0, 0)))

    # One-time lane-friendly im2col in the wrapper (tiny):
    #   cols[b, l, k*C_in + c] = x[b, c, l + k]
    # Keeps the per-step kernel body free of K-way slice/concat XLU work.
    cols = jnp.stack([x_p[:, :, k:k + l_out] for k in range(k_eff)], axis=-1)
    cols = jnp.transpose(cols, (0, 2, 3, 1)).reshape(n_pad, l_out, kc)
    cols = cols.astype(jnp.float32)

    flops = 2 * n_pad * l_out * kc * c_pad + 2 * n_pad * c_pad * classes_pad
    bytes_accessed = 4 * (cols.size + prep["w2"].size + prep["b_col"].size
                          + prep["fc_w_pad"].size + prep["fc_b_pad"].size
                          + n_pad * classes_pad)

    out_pad = pl.pallas_call(
        _fused_kernel,
        out_shape=jax.ShapeDtypeStruct((n_pad, classes_pad), x.dtype),
        grid=(grid,),
        in_specs=[
            pl.BlockSpec((b_tile, l_out, kc), lambda i: (i, 0, 0)),
            pl.BlockSpec(prep["w2"].shape, lambda i: (0, 0)),        # resident
            pl.BlockSpec(prep["b_col"].shape, lambda i: (0, 0)),
            pl.BlockSpec(prep["fc_w_pad"].shape, lambda i: (0, 0)),
            pl.BlockSpec(prep["fc_b_pad"].shape, lambda i: (0, 0)),
        ],
        out_specs=pl.BlockSpec((b_tile, classes_pad), lambda i: (i, 0)),
        compiler_params=pltpu.CompilerParams(dimension_semantics=("parallel",)),
        cost_estimate=pl.CostEstimate(flops=int(flops), transcendentals=0,
                                      bytes_accessed=int(bytes_accessed)),
    )(cols, prep["w2"], prep["b_col"], prep["fc_w_pad"], prep["fc_b_pad"])

    # Drop the batch / lane padding added for dense stores.
    return out_pad[:n, :classes]


# ---------------------------------------------------------------------------
# Parameters: PyTorch-layout init + one-time repack into kernel layout.
# ---------------------------------------------------------------------------
def init_params(key, in_chs, out_chs, k_size, layer_sz, classes):
    params = {"convs": []}
    keys = jax.random.split(key, 2 * layer_sz + 2)
    for i in range(layer_sz):
        w = jax.random.normal(
            keys[2 * i], (out_chs[i], in_chs[i], k_size[i]), jnp.float32) * 0.1
        b = jax.random.normal(keys[2 * i + 1], (out_chs[i],), jnp.float32) * 0.1
        params["convs"].append((w, b))
    # PyTorch fc weight layout: (classes, C_last)
    params["fc_w"] = jax.random.normal(
        keys[-2], (classes, out_chs[-1]), jnp.float32) * 0.1
    params["fc_b"] = jax.random.normal(keys[-1], (classes,), jnp.float32) * 0.1
    return params


def _compose_convs(convs):
    """Compose a stack of valid/stride-1 Conv1d layers (no nonlinearity between
    them) into a single effective conv.  Exact; done once on the host."""
    w_eff, b_eff = convs[0]
    w_eff = w_eff.astype(jnp.float32)
    b_eff = b_eff.astype(jnp.float32)
    for (w, b) in convs[1:]:
        w = w.astype(jnp.float32)
        b = b.astype(jnp.float32)
        c_out, _, k = w.shape
        _, c_in, k_prev = w_eff.shape
        w_new = jnp.zeros((c_out, c_in, k_prev + k - 1), jnp.float32)
        for kk in range(k):   # tiny host loop
            w_new = w_new.at[:, :, kk:kk + k_prev].add(
                jnp.einsum('om,mck->ock', w[:, :, kk], w_eff))
        b_eff = b + jnp.einsum('omk,m->o', w, b_eff)
        w_eff = w_new
    return w_eff, b_eff


def prepare_params(params, classes, lane=LANE):
    """One-time host-side repack: compose the conv stack, flatten to im2col
    layout, transpose + zero-pad FC to 128 lanes."""
    w_eff, b_eff = _compose_convs(params["convs"])
    c_out, c_in, k_eff = w_eff.shape

    c_pad = _round_up(c_out, lane)
    classes_pad = _round_up(classes, lane)

    # w2[k*C_in + c, co] = w_eff[co, c, k]  (matches wrapper im2col column order)
    w2 = jnp.transpose(w_eff, (2, 1, 0)).reshape(k_eff * c_in, c_out)
    w2 = jnp.pad(w2, ((0, 0), (0, c_pad - c_out)))
    b_col = jnp.pad(b_eff.reshape(1, c_out), ((0, 0), (0, c_pad - c_out)))

    fc_w_pad = jnp.zeros((c_pad, classes_pad), jnp.float32)
    fc_w_pad = fc_w_pad.at[:c_out, :classes].set(params["fc_w"].T)
    fc_b_pad = jnp.zeros((1, classes_pad), jnp.float32)
    fc_b_pad = fc_b_pad.at[:, :classes].set(params["fc_b"])

    return {"w2": w2, "b_col": b_col,
            "fc_w_pad": fc_w_pad, "fc_b_pad": fc_b_pad,
            "k_eff": int(k_eff), "classes": int(classes)}


if __name__ == "__main__":
    # Small, forward-consistent shapes (batch chosen so the grid has 2 steps).
    batch = 16
    length = 16
    layer_sz = 2
    in_chs = [4, 8]
    out_chs = [8, 16]
    k_size = [3, 3]
    classes = 5

    key = jax.random.PRNGKey(0)
    k_params, k_x = jax.random.split(key)

    params = init_params(k_params, in_chs, out_chs, k_size, layer_sz, classes)
    prep = prepare_params(params, classes)
    x = jax.random.normal(k_x, (batch, in_chs[0], length), jnp.float32)
    xxx = jnp.zeros((1,), jnp.float32)  # unused second arg of forward

    out = my_model_forward(prep, x, xxx)
    out = jax.block_until_ready(out)

    # Pure-JAX reference of the PyTorch module (per-layer, un-composed, so it
    # also cross-checks the host-side conv composition).
    ref = x
    for (w, b) in params["convs"]:
        ref = jax.lax.conv_general_dilated(
            ref, w, window_strides=(1,), padding="VALID",
            dimension_numbers=("NCH", "OIH", "NCH"),
        ) + b[None, :, None]
    ref = jnp.maximum(ref, 0.0).sum(axis=-1).reshape(-1, out_chs[-1])
    ref = ref @ params["fc_w"].T + params["fc_b"]

    assert out.shape == (batch, classes), out.shape
    assert jnp.allclose(out, ref, atol=1e-4, rtol=1e-4), \
        float(jnp.abs(out - ref).max())

    print("KERNEL_OK")
</pallas_src>

<mosaic_0001>
module attributes {stable_mosaic.version = 11 : i64} {
  func.func @_fused_kernel(%arg0: i32, %arg1: memref<8x12x20xf32, #tpu.memory_space<vmem>>, %arg2: memref<20x128xf32, #tpu.memory_space<vmem>>, %arg3: memref<1x128xf32, #tpu.memory_space<vmem>>, %arg4: memref<128x128xf32, #tpu.memory_space<vmem>>, %arg5: memref<1x128xf32, #tpu.memory_space<vmem>>, %arg6: memref<8x128xf32, #tpu.memory_space<vmem>>) attributes {dimension_semantics = [#tpu.dimension_semantics<parallel>], iteration_bounds = array<i64: 2>, scalar_prefetch = 0 : i64, scratch_operands = 0 : i64, tpu.core_type = #tpu.core_type<tc>, window_params = [{transform_indices = @transform_0, window_bounds = array<i64: 8, 12, 20>}, {pipeline_mode = #tpu.pipeline_mode<synchronous>, transform_indices = @transform_1, window_bounds = array<i64: 20, 128>}, {pipeline_mode = #tpu.pipeline_mode<synchronous>, transform_indices = @transform_2, window_bounds = array<i64: 1, 128>}, {pipeline_mode = #tpu.pipeline_mode<synchronous>, transform_indices = @transform_3, window_bounds = array<i64: 128, 128>}, {pipeline_mode = #tpu.pipeline_mode<synchronous>, transform_indices = @transform_4, window_bounds = array<i64: 1, 128>}, {transform_indices = @transform_5, window_bounds = array<i64: 8, 128>}]} {
    %c0 = arith.constant 0 : index
    %c0_0 = arith.constant 0 : index
    %c0_1 = arith.constant 0 : index
    %0 = vector.load %arg1[%c0, %c0_0, %c0_1] : memref<8x12x20xf32, #tpu.memory_space<vmem>>, vector<8x12x20xf32>
    %1 = vector.shape_cast %0 : vector<8x12x20xf32> to vector<96x20xf32>
    %c0_2 = arith.constant 0 : index
    %c0_3 = arith.constant 0 : index
    %2 = vector.load %arg2[%c0_2, %c0_3] : memref<20x128xf32, #tpu.memory_space<vmem>>, vector<20x128xf32>
    %cst = arith.constant dense<0.000000e+00> : vector<96x128xf32>
    %3 = tpu.matmul %1, %2, %cst {dimension_numbers = #tpu.dot_dimension_numbers<[1], [0], [0], [1], [0, 0, 1, 1], [], []>} : vector<96x20xf32>, vector<20x128xf32>, vector<96x128xf32> -> vector<96x128xf32>
    %c0_4 = arith.constant 0 : index
    %c0_5 = arith.constant 0 : index
    %4 = vector.load %arg3[%c0_4, %c0_5] : memref<1x128xf32, #tpu.memory_space<vmem>>, vector<1x128xf32>
    %5 = vector.broadcast %4 : vector<1x128xf32> to vector<96x128xf32>
    %6 = arith.addf %3, %5 : vector<96x128xf32>
    %cst_6 = arith.constant 0.000000e+00 : f32
    %7 = vector.broadcast %cst_6 : f32 to vector<96x128xf32>
    %8 = arith.maximumf %6, %7 : vector<96x128xf32>
    %9 = vector.shape_cast %8 : vector<96x128xf32> to vector<8x12x128xf32>
    %cst_7 = arith.constant dense<0.000000e+00> : vector<8x128xf32>
    %10 = vector.multi_reduction <add>, %9, %cst_7 [1] : vector<8x12x128xf32> to vector<8x128xf32>
    %c0_8 = arith.constant 0 : index
    %c0_9 = arith.constant 0 : index
    %11 = vector.load %arg4[%c0_8, %c0_9] : memref<128x128xf32, #tpu.memory_space<vmem>>, vector<128x128xf32>
    %cst_10 = arith.constant dense<0.000000e+00> : vector<8x128xf32>
    %12 = tpu.matmul %10, %11, %cst_10 {dimension_numbers = #tpu.dot_dimension_numbers<[1], [0], [0], [1], [0, 0, 1, 1], [], []>} : vector<8x128xf32>, vector<128x128xf32>, vector<8x128xf32> -> vector<8x128xf32>
    %c0_11 = arith.constant 0 : index
    %c0_12 = arith.constant 0 : index
    %13 = vector.load %arg5[%c0_11, %c0_12] : memref<1x128xf32, #tpu.memory_space<vmem>>, vector<1x128xf32>
    %14 = vector.broadcast %13 : vector<1x128xf32> to vector<8x128xf32>
    %15 = arith.addf %12, %14 : vector<8x128xf32>
    %c0_13 = arith.constant 0 : index
    %c0_14 = arith.constant 0 : index
    %16 = vector.load %arg6[%c0_13, %c0_14] : memref<8x128xf32, #tpu.memory_space<vmem>>, vector<8x128xf32>
    tpu.vector_store %arg6[%c0_13, %c0_14], %15 {strides = array<i32>} : memref<8x128xf32, #tpu.memory_space<vmem>>, vector<8x128xf32>,
    return
  }
  func.func @transform_0(%arg0: i32) -> (i32, i32, i32) {
    %c0_i32 = arith.constant 0 : i32
    %c0_i32_0 = arith.constant 0 : i32
    %c0_i32_1 = arith.constant 0 : i32
    return %arg0, %c0_i32, %c0_i32_0 : i32, i32, i32
  }
  func.func @transform_1(%arg0: i32) -> (i32, i32) {
    %c0_i32 = arith.constant 0 : i32
    %c0_i32_0 = arith.constant 0 : i32
    %c0_i32_1 = arith.constant 0 : i32
    return %c0_i32, %c0_i32_0 : i32, i32
  }
  func.func @transform_2(%arg0: i32) -> (i32, i32) {
    %c0_i32 = arith.constant 0 : i32
    %c0_i32_0 = arith.constant 0 : i32
    %c0_i32_1 = arith.constant 0 : i32
    return %c0_i32, %c0_i32_0 : i32, i32
  }
  func.func @transform_3(%arg0: i32) -> (i32, i32) {
    %c0_i32 = arith.constant 0 : i32
    %c0_i32_0 = arith.constant 0 : i32
    %c0_i32_1 = arith.constant 0 : i32
    return %c0_i32, %c0_i32_0 : i32, i32
  }
  func.func @transform_4(%arg0: i32) -> (i32, i32) {
    %c0_i32 = arith.constant 0 : i32
    %c0_i32_0 = arith.constant 0 : i32
    %c0_i32_1 = arith.constant 0 : i32
    return %c0_i32, %c0_i32_0 : i32, i32
  }
  func.func @transform_5(%arg0: i32) -> (i32, i32) {
    %c0_i32 = arith.constant 0 : i32
    %c0_i32_0 = arith.constant 0 : i32
    return %arg0, %c0_i32 : i32, i32
  }
}

</mosaic_0001>

<llo_original>
// kernel: tpu_custom_call.1
$region0: #{tpu_custom_call.1}
  #allocation0 [shape = 'u32[]', space=smem, size = 0x4, offset = 0x4, fixed_abs, tag = 'smem constant byte address 0x4 - core index']
  #allocation1 [shape = 'u32[144,128]{1,0:T(1,128)}', space=vmem, size = 0x12000, scoped, tag = 'internal scratch']
  %s0 = inlined_call_operand.vmem [shape: f32[16,12,20], index: 0, kind: input, shape index: {}]
  %s1 = inlined_call_operand.vmem [shape: f32[20,128], index: 1, kind: input, shape index: {}]
  %s2 = inlined_call_operand.vmem [shape: f32[1,128], index: 2, kind: input, shape index: {}]
  %s3 = inlined_call_operand.vmem [shape: f32[128,128], index: 3, kind: input, shape index: {}]
  %s4 = inlined_call_operand.vmem [shape: f32[1,128], index: 4, kind: input, shape index: {}]
  %s5 = inlined_call_operand.hbm [shape: f32[16,128], index: 5, kind: output, shape index: {}]
  %s6 = sld [smem:[#allocation0]]
  $region53: #{tpu_custom_call.1} parent=0
    _
  %s8 = ssub.s32 1, %s6
  %s9 = scalar_select 0, %s8, %s6
  $region1: #{tpu_custom_call.1} parent=0
    #allocation2 [shape = 'u8[8192]{0}', space=vmem, size = 0x2000, scoped, tag = 'output window, operand 0']
    #allocation3 [shape = 's32[2]{0}', space=sflag, size = 0x8, scoped, tag = 'scoped memory for tpu_custom_call.1']
    %10 = vsyncpa [#allocation3], 0
    %s11 = scalar_lea.sflag [#allocation3], 1
    %12 = vsyncpa %s11, 0
    loop: start=0, step=1, limit=4
    $region2: #{tpu_custom_call.1} parent=1 // loop_pre_header
      _
    $region3: #{tpu_custom_call.1} parent=1 // loop_header
      %s14 = sphi 0, %s18
      %p15 = scmp.ge.s32.totalorder %s14, 4
      %s24 = sphi 0, %s26
      %s27 = sphi 0, %s24
      %s28 = sphi 0, %s27
      %s44 = sphi 0, %s28
      %s48 = sphi 0, %s48
      %s50 = sphi 0, %s48
      %s51 = sphi 0, %s50
      %s65 = sphi 0, %s51
      %s69 = sphi 0, %s69
      %s71 = sphi 0, %s69
      %s72 = sphi 0, %s71
      %s86 = sphi 0, %s72
      %s90 = sphi 0, %s90
      %s92 = sphi 0, %s90
      %s93 = sphi 0, %s92
      %s107 = sphi 0, %s93
      %s111 = sphi 0, %s111
      %s113 = sphi 0, %s111
      %s114 = sphi 0, %s113
      %s128 = sphi 0, %s114
      %s134 = sphi 0, %s136
      %s137 = sphi 0, %s134
      %s138 = sphi 0, %s137
      %s154 = sphi 0, %s138
    $region4: #{tpu_custom_call.1} parent=1 // loop_header_branch
      %17 = sbr.rel (%p15) target = $region8
    $region5: #{tpu_custom_call.1} parent=1 // loop_body
      %s19 = ssub.s32 %s14, 1
      %s20 = ssub.s32 %s14, 2
      %s21 = sadd.s32 %s14, 1
      %s22 = ssub.s32 %s14, %s21
      %p23 = scmp.eq.s32.totalorder %s22, 0
      %s25 = sadd.s32 %s24, 1
      %s26 = scalar_select %p23, %s24, %s25
      %p29 = pneg %p23
      %p30 = scmp.eq.s32.totalorder %s14, 1
      %p31 = por %p29, %p30
      %p32 = scmp.ne.s32.totalorder %s24, %s27
      %p33 = scmp.eq.s32.totalorder %s14, 0
      %p34 = por %p32, %p33
      %p35 = scmp.ne.s32.totalorder %s24, %s27
      %p36 = scmp.eq.s32.totalorder %s19, 1
      %p37 = por %p35, %p36
      %p38 = scmp.ne.s32.totalorder %s27, %s28
      %p39 = scmp.eq.s32.totalorder %s19, 0
      %p40 = por %p38, %p39
      %p41 = scmp.ne.s32.totalorder %s27, %s28
      %p42 = scmp.eq.s32.totalorder %s20, 1
      %p43 = por %p41, %p42
      %p45 = scmp.ne.s32.totalorder %s28, %s44
      %p46 = scmp.eq.s32.totalorder %s20, 0
      %p47 = por %p45, %p46
      %s49 = sadd.s32 %s48, 1
      %p52 = scmp.eq.s32.totalorder %s14, 1
      %p53 = scmp.ne.s32.totalorder %s48, %s50
      %p54 = scmp.eq.s32.totalorder %s14, 0
      %p55 = por %p53, %p54
      %p56 = scmp.ne.s32.totalorder %s48, %s50
      %p57 = scmp.eq.s32.totalorder %s19, 1
      %p58 = por %p56, %p57
      %p59 = scmp.ne.s32.totalorder %s50, %s51
      %p60 = scmp.eq.s32.totalorder %s19, 0
      %p61 = por %p59, %p60
      %p62 = scmp.ne.s32.totalorder %s50, %s51
      %p63 = scmp.eq.s32.totalorder %s20, 1
      %p64 = por %p62, %p63
      %p66 = scmp.ne.s32.totalorder %s51, %s65
      %p67 = scmp.eq.s32.totalorder %s20, 0
      %p68 = por %p66, %p67
      %s70 = sadd.s32 %s69, 1
      %p73 = scmp.eq.s32.totalorder %s14, 1
      %p74 = scmp.ne.s32.totalorder %s69, %s71
      %p75 = scmp.eq.s32.totalorder %s14, 0
      %p76 = por %p74, %p75
      %p77 = scmp.ne.s32.totalorder %s69, %s71
      %p78 = scmp.eq.s32.totalorder %s19, 1
      %p79 = por %p77, %p78
      %p80 = scmp.ne.s32.totalorder %s71, %s72
      %p81 = scmp.eq.s32.totalorder %s19, 0
      %p82 = por %p80, %p81
      %p83 = scmp.ne.s32.totalorder %s71, %s72
      %p84 = scmp.eq.s32.totalorder %s20, 1
      %p85 = por %p83, %p84
      %p87 = scmp.ne.s32.totalorder %s72, %s86
      %p88 = scmp.eq.s32.totalorder %s20, 0
      %p89 = por %p87, %p88
      %s91 = sadd.s32 %s90, 1
      %p94 = scmp.eq.s32.totalorder %s14, 1
      %p95 = scmp.ne.s32.totalorder %s90, %s92
      %p96 = scmp.eq.s32.totalorder %s14, 0
      %p97 = por %p95, %p96
      %p98 = scmp.ne.s32.totalorder %s90, %s92
      %p99 = scmp.eq.s32.totalorder %s19, 1
      %p100 = por %p98, %p99
      %p101 = scmp.ne.s32.totalorder %s92, %s93
      %p102 = scmp.eq.s32.totalorder %s19, 0
      %p103 = por %p101, %p102
      %p104 = scmp.ne.s32.totalorder %s92, %s93
      %p105 = scmp.eq.s32.totalorder %s20, 1
      %p106 = por %p104, %p105
      %p108 = scmp.ne.s32.totalorder %s93, %s107
      %p109 = scmp.eq.s32.totalorder %s20, 0
      %p110 = por %p108, %p109
      %s112 = sadd.s32 %s111, 1
      %p115 = scmp.eq.s32.totalorder %s14, 1
      %p116 = scmp.ne.s32.totalorder %s111, %s113
      %p117 = scmp.eq.s32.totalorder %s14, 0
      %p118 = por %p116, %p117
      %p119 = scmp.ne.s32.totalorder %s111, %s113
      %p120 = scmp.eq.s32.totalorder %s19, 1
      %p121 = por %p119, %p120
      %p122 = scmp.ne.s32.totalorder %s113, %s114
      %p123 = scmp.eq.s32.totalorder %s19, 0
      %p124 = por %p122, %p123
      %p125 = scmp.ne.s32.totalorder %s113, %s114
      %p126 = scmp.eq.s32.totalorder %s20, 1
      %p127 = por %p125, %p126
      %p129 = scmp.ne.s32.totalorder %s114, %s128
      %p130 = scmp.eq.s32.totalorder %s20, 0
      %p131 = por %p129, %p130
      %s132 = ssub.s32 %s14, %s21
      %p133 = scmp.eq.s32.totalorder %s132, 0
      %s135 = sadd.s32 %s134, 1
      %s136 = scalar_select %p133, %s134, %s135
      %p139 = pneg %p133
      %p140 = scmp.eq.s32.totalorder %s14, 1
      %p141 = por %p139, %p140
      %p142 = scmp.ne.s32.totalorder %s134, %s137
      %p143 = scmp.eq.s32.totalorder %s14, 0
      %p144 = por %p142, %p143
      %p145 = scmp.ne.s32.totalorder %s134, %s137
      %p146 = scmp.eq.s32.totalorder %s19, 1
      %p147 = por %p145, %p146
      %p148 = scmp.ne.s32.totalorder %s137, %s138
      %p149 = scmp.eq.s32.totalorder %s19, 0
      %p150 = por %p148, %p149
      %p151 = scmp.ne.s32.totalorder %s137, %s138
      %p152 = scmp.eq.s32.totalorder %s20, 1
      %p153 = por %p151, %p152
      %p155 = scmp.ne.s32.totalorder %s138, %s154
      %p156 = scmp.eq.s32.totalorder %s20, 0
      %p157 = por %p155, %p156
      %p158 = scmp.le.s32.totalorder 1, %s14
      %p159 = scmp.lt.s32.totalorder %s14, 3
      %p160 = pnand %p158, %p159
      %p161 = pneg %p160
      // Predicated region
      $region9: #{tpu_custom_call.1} parent=5 // pred_check
        _
      $region10: #{tpu_custom_call.1} parent=5 // pred_check_branch
        %163 = sbr.rel (%p160) target = $region12
      $region11: #{tpu_custom_call.1} parent=5 // pred_region
        %s164 = ssub.s32 %s14, 1
        // Predicated region
        $region13: #{tpu_custom_call.1} parent=11 // pred_check
          %p165 = pneg %p61
        $region14: #{tpu_custom_call.1} parent=11 // pred_check_branch
          %167 = sbr.rel (%p165) target = $region16
        $region15: #{tpu_custom_call.1} parent=11 // pred_region
          _
        $region16: #{tpu_custom_call.1} parent=11 // pred_fallthru
          _
        // Predicated region
        $region17: #{tpu_custom_call.1} parent=11 // pred_check
          %p168 = pneg %p82
        $region18: #{tpu_custom_call.1} parent=11 // pred_check_branch
          %170 = sbr.rel (%p168) target = $region20
        $region19: #{tpu_custom_call.1} parent=11 // pred_region
          _
        $region20: #{tpu_custom_call.1} parent=11 // pred_fallthru
          _
        // Predicated region
        $region21: #{tpu_custom_call.1} parent=11 // pred_check
          %p171 = pneg %p103
        $region22: #{tpu_custom_call.1} parent=11 // pred_check_branch
          %173 = sbr.rel (%p171) target = $region24
        $region23: #{tpu_custom_call.1} parent=11 // pred_region
          _
        $region24: #{tpu_custom_call.1} parent=11 // pred_fallthru
          _
        // Predicated region
        $region25: #{tpu_custom_call.1} parent=11 // pred_check
          %p174 = pneg %p124
        $region26: #{tpu_custom_call.1} parent=11 // pred_check_branch
          %176 = sbr.rel (%p174) target = $region28
        $region27: #{tpu_custom_call.1} parent=11 // pred_region
          _
        $region28: #{tpu_custom_call.1} parent=11 // pred_fallthru
          _
      $region12: #{tpu_custom_call.1} parent=5 // pred_fallthru
        _
      %p177 = scmp.lt.s32.totalorder %s14, 2
      // Predicated region
      $region29: #{tpu_custom_call.1} parent=5 // pred_check
        %p178 = pneg %p177
      $region30: #{tpu_custom_call.1} parent=5 // pred_check_branch
        %180 = sbr.rel (%p178) target = $region32
      $region31: #{tpu_custom_call.1} parent=5 // pred_region
        // Predicated region
        $region33: #{tpu_custom_call.1} parent=31 // pred_check
          %p181 = pneg %p34
        $region34: #{tpu_custom_call.1} parent=31 // pred_check_branch
          %183 = sbr.rel (%p181) target = $region36
        $region35: #{tpu_custom_call.1} parent=31 // pred_region
          %s184 = smul.u32 8, %s14
          %p185 = scmp.lt.s32.totalorder %s184, 15
          %s186 = scalar_select %p185, %s184, 15
          %s187 = smul.addr %s186, 2
          %s188 = smul.addr %s187, 8
          %s189 = scalar_lea.vmem %s0, %s188
          %s190 = smul.u32 8, %s14
        $region36: #{tpu_custom_call.1} parent=31 // pred_fallthru
          _
      $region32: #{tpu_custom_call.1} parent=5 // pred_fallthru
        _
      %p191 = scmp.le.s32.totalorder 1, %s14
      %p192 = scmp.lt.s32.totalorder %s14, 3
      %p193 = pnand %p191, %p192
      %p194 = pneg %p193
      // Predicated region
      $region37: #{tpu_custom_call.1} parent=5 // pred_check
        _
      $region38: #{tpu_custom_call.1} parent=5 // pred_check_branch
        %196 = sbr.rel (%p193) target = $region40
      $region39: #{tpu_custom_call.1} parent=5 // pred_region
        %s197 = ssub.s32 %s14, 1
        %s198 = smul.u32 8, %s19
        %p199 = scmp.lt.s32.totalorder %s198, 15
        %s200 = scalar_select %p199, %s198, 15
        %s201 = smul.addr %s200, 2
        %s202 = smul.addr %s201, 8
        %s203 = scalar_lea.vmem %s0, %s202
        %p204 = pneg %p40
        %p205 = pneg %p37
        %p206 = pneg %p61
        %p207 = pneg %p58
        %p208 = pneg %p82
        %p209 = pneg %p79
        %p210 = pneg %p103
        %p211 = pneg %p100
        %p212 = pneg %p124
        %p213 = pneg %p121
        %p214 = pneg %p150
        %p215 = pneg %p147
        %s216 = sand.u32 %s137, 1
        %s217 = scalar_lea.sflag [#allocation3], %s216
        %s218 = sand.u32 %s137, 1
        %s219 = smul.addr %s218, 8
        %s220 = scalar_lea.vmem [#allocation2], %s219
        %s221 = smul.u32 8, %s19
        %p222 = scmp.lt.s32.totalorder %s221, 15
        %s223 = scalar_select %p222, %s221, 15
        %s224 = smul.addr %s223, 2
        %s225 = smul.addr %s224, 8
        %s226 = scalar_lea.vmem %s0, %s225
        %s227 = smul.u32 8, %s19
        %v228 = vld [vmem:[%s226] sm:$0xff]
        %v229 = vld [vmem:[%s226 + $0x8] sm:$0xf]
        %v230 = vld [vmem:[%s226 + $0x10] sm:$0xff]
        %v231 = vld [vmem:[%s226 + $0x18] sm:$0xf]
        %v232 = vld [vmem:[%s226 + $0x20] sm:$0xff]
        %v233 = vld [vmem:[%s226 + $0x28] sm:$0xf]
        %v234 = vld [vmem:[%s226 + $0x30] sm:$0xff]
        %v235 = vld [vmem:[%s226 + $0x38] sm:$0xf]
        %v236 = vld [vmem:[%s226 + $0x40] sm:$0xff]
        %v237 = vld [vmem:[%s226 + $0x48] sm:$0xf]
        %v238 = vld [vmem:[%s226 + $0x50] sm:$0xff]
        %v239 = vld [vmem:[%s226 + $0x58] sm:$0xf]
        %v240 = vld [vmem:[%s226 + $0x60] sm:$0xff]
        %v241 = vld [vmem:[%s226 + $0x68] sm:$0xf]
        %v242 = vld [vmem:[%s226 + $0x70] sm:$0xff]
        %v243 = vld [vmem:[%s226 + $0x78] sm:$0xf]
        %v260 = vcombine.high %v228, %v228
        %v261 = vcombine.high %v230, %v230
        %v262 = vcombine.high %v232, %v232
        %v263 = vcombine.high %v234, %v234
        %v264 = vcombine.high %v236, %v236
        %v265 = vcombine.high %v238, %v238
        %v266 = vcombine.high %v240, %v240
        %v267 = vcombine.high %v242, %v242
        %v268 = vld [vmem:[%s1] sm:$0xff]
        %v269 = vld [vmem:[%s1 + $0x8] sm:$0xff]
        %v270 = vld [vmem:[%s1 + $0x10] sm:$0xf]
        %v271 = vld [vmem:[%s2] sm:$0x1]
        %v273 = vlaneseq
        %v274 = vshrl.u32 %v273, 7
        %v275 = vsub.s32 0, %v274
        %v276 = vrot.slane %v271, %v275
        %v278 = vcombine.low %v228, %v260
        %v279 = vcombine.low %v229, %v230
        %v280 = vcombine.low %v261, %v231
        %v281 = vcombine.low %v232, %v262
        %v282 = vcombine.low %v233, %v234
        %v283 = vcombine.low %v263, %v235
        %v284 = vcombine.low %v236, %v264
        %v285 = vcombine.low %v237, %v238
        %v286 = vcombine.low %v265, %v239
        %v287 = vcombine.low %v240, %v266
        %v288 = vcombine.low %v241, %v242
        %v289 = vcombine.low %v267, %v243
        %vm290 = vcmask 162816
        %v291 = vsel %vm290, %v278, 0
        %v293 = vsel %vm290, %v279, 0
        %v295 = vsel %vm290, %v280, 0
        %v297 = vsel %vm290, %v281, 0
        %v299 = vsel %vm290, %v282, 0
        %v301 = vsel %vm290, %v283, 0
        %v303 = vsel %vm290, %v284, 0
        %v305 = vsel %vm290, %v285, 0
        %v307 = vsel %vm290, %v286, 0
        %v309 = vsel %vm290, %v287, 0
        %v311 = vsel %vm290, %v288, 0
        %v313 = vsel %vm290, %v289, 0
        %vm315 = vcmask 1043456
        %v317 = vsel %vm315, %v270, 0
        %319 = vmatprep.subr.mxu0 0.0
        %320 = vmatpush1.msra.mxu0 0.0
        %321 = vmatprep.subr.mxu0 0.0
        %322 = vmatpush1.msra.mxu0 0.0
        %323 = vmatprep.subr.mxu0 0.0
        %324 = vmatpush1.msra.mxu0 0.0
        %325 = vmatprep.subr.mxu0 0.0
        %326 = vmatpush1.msra.mxu0 0.0
        %327 = vmatprep.subr.mxu0 0.0
        %328 = vmatpush1.msra.mxu0 0.0
        %329 = vmatprep.subr.mxu0 0.0
        %330 = vmatpush1.msra.mxu0 0.0
        %331 = vmatprep.subr.mxu0 0.0
        %332 = vmatpush1.msra.mxu0 0.0
        %333 = vmatprep.subr.mxu0 0.0
        %334 = vmatpush1.msra.mxu0 0.0
        %335 = vmatprep.subr.mxu0 0.0
        %336 = vmatpush1.msra.mxu0 0.0
        %337 = vmatprep.subr.mxu0 0.0
        %338 = vmatpush1.msra.mxu0 0.0
        %339 = vmatprep.subr.mxu0 0.0
        %340 = vmatpush1.msra.mxu0 0.0
        %341 = vmatprep.subr.mxu0 0.0
        %342 = vmatpush1.msra.mxu0 0.0
        %343 = vmatprep.subr.mxu0 0.0
        %344 = vmatpush1.msra.mxu0 0.0
        %345 = vmatprep.subr.mxu0 0.0
        %346 = vmatpush1.msra.mxu0 %v317
        %347 = vmatprep.subr.mxu0 0.0
        %348 = vmatpush1.msra.mxu0 %v269
        %349 = vmatprep.subr.mxu0 0.0
        %350 = vmatpush1.msra.mxu0 %v268
        %351 = vmatprep.subr.mxu0 0.0
        %352 = vmatpush2.msra.mxu0 0.0
        %353 = vmatprep.subr.mxu0 0.0
        %354 = vmatpush2.msra.mxu0 0.0
        %355 = vmatprep.subr.mxu0 0.0
        %356 = vmatpush2.msra.mxu0 0.0
        %357 = vmatprep.subr.mxu0 0.0
        %358 = vmatpush2.msra.mxu0 0.0
        %359 = vmatprep.subr.mxu0 0.0
        %360 = vmatpush2.msra.mxu0 0.0
        %361 = vmatprep.subr.mxu0 0.0
        %362 = vmatpush2.msra.mxu0 0.0
        %363 = vmatprep.subr.mxu0 0.0
        %364 = vmatpush2.msra.mxu0 0.0
        %365 = vmatprep.subr.mxu0 0.0
        %366 = vmatpush2.msra.mxu0 0.0
        %367 = vmatprep.subr.mxu0 0.0
        %368 = vmatpush2.msra.mxu0 0.0
        %369 = vmatprep.subr.mxu0 0.0
        %370 = vmatpush2.msra.mxu0 0.0
        %371 = vmatprep.subr.mxu0 0.0
        %372 = vmatpush2.msra.mxu0 0.0
        %373 = vmatprep.subr.mxu0 0.0
        %374 = vmatpush2.msra.mxu0 0.0
        %375 = vmatprep.subr.mxu0 0.0
        %376 = vmatpush2.msra.mxu0 0.0
        %377 = vmatprep.subr.mxu0 0.0
        %378 = vmatpush2.msra.mxu0 0.0
        %379 = vmatprep.subr.mxu0 0.0
        %380 = vmatpush2.msra.mxu0 0.0
        %381 = vmatprep.subr.mxu0 0.0
        %382 = vmatpush2.msra.mxu0 0.0
        %383 = vmatprep.mubr.f32.mxu0 0.0
        %384 = vmatmul.mubr.f32.gmra.mxu0 %v291
        %v385 = vpop.f32.mrf.mxu0
        %v386 = vadd.f32 %v276, %v385
        %v387 = vpop.f32.mrf.mxu0
        %388 = vmatprep.mubr.f32.mxu0 0.0
        %389 = vmatmul.mubr.f32.gmra.mxu0 %v293
        %v390 = vpop.f32.mrf.mxu0
        %v391 = vadd.f32 %v276, %v390
        %v392 = vpop.f32.mrf.mxu0
        %393 = vmatprep.mubr.f32.mxu0 0.0
        %394 = vmatmul.mubr.f32.gmra.mxu0 %v295
        %v395 = vpop.f32.mrf.mxu0
        %v396 = vadd.f32 %v276, %v395
        %v397 = vpop.f32.mrf.mxu0
        %398 = vmatprep.mubr.f32.mxu0 0.0
        %399 = vmatmul.mubr.f32.gmra.mxu0 %v297
        %v400 = vpop.f32.mrf.mxu0
        %v401 = vadd.f32 %v276, %v400
        %v402 = vpop.f32.mrf.mxu0
        %403 = vmatprep.mubr.f32.mxu0 0.0
        %404 = vmatmul.mubr.f32.gmra.mxu0 %v299
        %v405 = vpop.f32.mrf.mxu0
        %v406 = vadd.f32 %v276, %v405
        %v407 = vpop.f32.mrf.mxu0
        %408 = vmatprep.mubr.f32.mxu0 0.0
        %409 = vmatmul.mubr.f32.gmra.mxu0 %v301
        %v410 = vpop.f32.mrf.mxu0
        %v411 = vadd.f32 %v276, %v410
        %v412 = vpop.f32.mrf.mxu0
        %413 = vmatprep.mubr.f32.mxu0 0.0
        %414 = vmatmul.mubr.f32.gmra.mxu0 %v303
        %v415 = vpop.f32.mrf.mxu0
        %v416 = vadd.f32 %v276, %v415
        %v417 = vpop.f32.mrf.mxu0
        %418 = vmatprep.mubr.f32.mxu0 0.0
        %419 = vmatmul.mubr.f32.gmra.mxu0 %v305
        %v420 = vpop.f32.mrf.mxu0
        %v421 = vadd.f32 %v276, %v420
        %v422 = vpop.f32.mrf.mxu0
        %423 = vmatprep.mubr.f32.mxu0 0.0
        %424 = vmatmul.mubr.f32.gmra.mxu0 %v307
        %v425 = vpop.f32.mrf.mxu0
        %v426 = vadd.f32 %v276, %v425
        %v427 = vpop.f32.mrf.mxu0
        %428 = vmatprep.mubr.f32.mxu0 0.0
        %429 = vmatmul.mubr.f32.gmra.mxu0 %v309
        %v430 = vpop.f32.mrf.mxu0
        %v431 = vadd.f32 %v276, %v430
        %v432 = vpop.f32.mrf.mxu0
        %433 = vmatprep.mubr.f32.mxu0 0.0
        %434 = vmatmul.mubr.f32.gmra.mxu0 %v311
        %v435 = vpop.f32.mrf.mxu0
        %v436 = vadd.f32 %v276, %v435
        %v437 = vpop.f32.mrf.mxu0
        %438 = vmatprep.mubr.f32.mxu0 0.0
        %439 = vmatmul.mubr.f32.gmra.mxu0 %v313
        %v440 = vpop.f32.mrf.mxu0
        %v441 = vadd.f32 %v276, %v440
        %v442 = vpop.f32.mrf.mxu0
        %443 = vdwg.mxu0
        %v444 = vmax.f32 %v386, 0.0
        %v445 = vmax.f32 %v391, 0.0
        %v446 = vmax.f32 %v396, 0.0
        %v447 = vmax.f32 %v401, 0.0
        %v448 = vmax.f32 %v406, 0.0
        %v449 = vmax.f32 %v411, 0.0
        %v450 = vmax.f32 %v416, 0.0
        %v451 = vmax.f32 %v421, 0.0
        %v452 = vmax.f32 %v426, 0.0
        %v453 = vmax.f32 %v431, 0.0
        %v454 = vmax.f32 %v436, 0.0
        %v455 = vmax.f32 %v441, 0.0
        %v468 = vcombine.high %v444, %v444
        %v469 = vcombine.high %v445, %v445
        %v470 = vcombine.high %v446, %v446
        %v471 = vcombine.high %v447, %v447
        %v472 = vcombine.high %v448, %v448
        %v473 = vcombine.high %v449, %v449
        %v474 = vcombine.high %v450, %v450
        %v475 = vcombine.high %v451, %v451
        %v476 = vcombine.high %v452, %v452
        %v477 = vcombine.high %v453, %v453
        %v478 = vcombine.high %v454, %v454
        %v479 = vcombine.high %v455, %v455
        %v484 = vcombine.low %v444, %v468
        %v485 = vcombine.low %v469, %v446
        %v486 = vcombine.low %v447, %v471
        %v487 = vcombine.low %v472, %v449
        %v488 = vcombine.low %v450, %v474
        %v489 = vcombine.low %v475, %v452
        %v490 = vcombine.low %v453, %v477
        %v491 = vcombine.low %v478, %v455
        %v500 = vsel %vm315, %v445, 0.0
        %v501 = vadd.f32 %v484, %v500
        %v502 = vrot.slane %v501, 4
        %v503 = vadd.f32 %v501, %v502
        %v504 = vrot.slane %v503, 2
        %v505 = vadd.f32 %v503, %v504
        %v506 = vrot.slane %v505, 1
        %v507 = vadd.f32 %v505, %v506
        %v508 = vsel %vm315, %v470, 0.0
        %v509 = vadd.f32 %v485, %v508
        %v510 = vrot.slane %v509, 4
        %v511 = vadd.f32 %v509, %v510
        %v512 = vrot.slane %v511, 2
        %v513 = vadd.f32 %v511, %v512
        %v514 = vrot.slane %v513, 1
        %v515 = vadd.f32 %v513, %v514
        %v516 = vsel %vm315, %v448, 0.0
        %v517 = vadd.f32 %v486, %v516
        %v518 = vrot.slane %v517, 4
        %v519 = vadd.f32 %v517, %v518
        %v520 = vrot.slane %v519, 2
        %v521 = vadd.f32 %v519, %v520
        %v522 = vrot.slane %v521, 1
        %v523 = vadd.f32 %v521, %v522
        %v524 = vsel %vm315, %v473, 0.0
        %v525 = vadd.f32 %v487, %v524
        %v526 = vrot.slane %v525, 4
        %v527 = vadd.f32 %v525, %v526
        %v528 = vrot.slane %v527, 2
        %v529 = vadd.f32 %v527, %v528
        %v530 = vrot.slane %v529, 1
        %v531 = vadd.f32 %v529, %v530
        %v532 = vsel %vm315, %v451, 0.0
        %v533 = vadd.f32 %v488, %v532
        %v534 = vrot.slane %v533, 4
        %v535 = vadd.f32 %v533, %v534
        %v536 = vrot.slane %v535, 2
        %v537 = vadd.f32 %v535, %v536
        %v538 = vrot.slane %v537, 1
        %v539 = vadd.f32 %v537, %v538
        %v540 = vsel %vm315, %v476, 0.0
        %v541 = vadd.f32 %v489, %v540
        %v542 = vrot.slane %v541, 4
        %v543 = vadd.f32 %v541, %v542
        %v544 = vrot.slane %v543, 2
        %v545 = vadd.f32 %v543, %v544
        %v546 = vrot.slane %v545, 1
        %v547 = vadd.f32 %v545, %v546
        %v548 = vsel %vm315, %v454, 0.0
        %v549 = vadd.f32 %v490, %v548
        %v550 = vrot.slane %v549, 4
        %v551 = vadd.f32 %v549, %v550
        %v552 = vrot.slane %v551, 2
        %v553 = vadd.f32 %v551, %v552
        %v554 = vrot.slane %v553, 1
        %v555 = vadd.f32 %v553, %v554
        %v556 = vsel %vm315, %v479, 0.0
        %v557 = vadd.f32 %v491, %v556
        %v558 = vrot.slane %v557, 4
        %v559 = vadd.f32 %v557, %v558
        %v560 = vrot.slane %v559, 2
        %v561 = vadd.f32 %v559, %v560
        %v562 = vrot.slane %v561, 1
        %v563 = vadd.f32 %v561, %v562
        %v564 = vld [vmem:[%s3] sm:$0xff]
        %v565 = vld [vmem:[%s3 + $0x8] sm:$0xff]
        %v566 = vld [vmem:[%s3 + $0x10] sm:$0xff]
        %v567 = vld [vmem:[%s3 + $0x18] sm:$0xff]
        %v568 = vld [vmem:[%s3 + $0x20] sm:$0xff]
        %v569 = vld [vmem:[%s3 + $0x28] sm:$0xff]
        %v570 = vld [vmem:[%s3 + $0x30] sm:$0xff]
        %v571 = vld [vmem:[%s3 + $0x38] sm:$0xff]
        %v572 = vld [vmem:[%s3 + $0x40] sm:$0xff]
        %v573 = vld [vmem:[%s3 + $0x48] sm:$0xff]
        %v574 = vld [vmem:[%s3 + $0x50] sm:$0xff]
        %v575 = vld [vmem:[%s3 + $0x58] sm:$0xff]
        %v576 = vld [vmem:[%s3 + $0x60] sm:$0xff]
        %v577 = vld [vmem:[%s3 + $0x68] sm:$0xff]
        %v578 = vld [vmem:[%s3 + $0x70] sm:$0xff]
        %v579 = vld [vmem:[%s3 + $0x78] sm:$0xff]
        %v580 = vld [vmem:[%s4] sm:$0x1]
        %v582 = vlaneseq
        %v583 = vshrl.u32 %v582, 7
        %v584 = vsub.s32 0, %v583
        %v585 = vrot.slane %v580, %v584
        %vm595 = vcmask 1041409
        %v596 = vsel %vm595, %v515, %v507
        %vm597 = vcmask 1042434
        %v598 = vsel %vm597, %v523, %v596
        %vm599 = vcmask 1043459
        %v600 = vsel %vm599, %v531, %v598
        %vm601 = vcmask 1044484
        %v602 = vsel %vm601, %v539, %v600
        %vm603 = vcmask 1045509
        %v604 = vsel %vm603, %v547, %v602
        %vm605 = vcmask 1046534
        %v606 = vsel %vm605, %v555, %v604
        %vm607 = vcmask 1047559
        %v608 = vsel %vm607, %v563, %v606
        %610 = vmatprep.subr.mxu0 0.0
        %611 = vmatpush1.msra.mxu0 %v579
        %612 = vmatprep.subr.mxu0 0.0
        %613 = vmatpush1.msra.mxu0 %v578
        %614 = vmatprep.subr.mxu0 0.0
        %615 = vmatpush1.msra.mxu0 %v577
        %616 = vmatprep.subr.mxu0 0.0
        %617 = vmatpush1.msra.mxu0 %v576
        %618 = vmatprep.subr.mxu0 0.0
        %619 = vmatpush1.msra.mxu0 %v575
        %620 = vmatprep.subr.mxu0 0.0
        %621 = vmatpush1.msra.mxu0 %v574
        %622 = vmatprep.subr.mxu0 0.0
        %623 = vmatpush1.msra.mxu0 %v573
        %624 = vmatprep.subr.mxu0 0.0
        %625 = vmatpush1.msra.mxu0 %v572
        %626 = vmatprep.subr.mxu0 0.0
        %627 = vmatpush1.msra.mxu0 %v571
        %628 = vmatprep.subr.mxu0 0.0
        %629 = vmatpush1.msra.mxu0 %v570
        %630 = vmatprep.subr.mxu0 0.0
        %631 = vmatpush1.msra.mxu0 %v569
        %632 = vmatprep.subr.mxu0 0.0
        %633 = vmatpush1.msra.mxu0 %v568
        %634 = vmatprep.subr.mxu0 0.0
        %635 = vmatpush1.msra.mxu0 %v567
        %636 = vmatprep.subr.mxu0 0.0
        %637 = vmatpush1.msra.mxu0 %v566
        %638 = vmatprep.subr.mxu0 0.0
        %639 = vmatpush1.msra.mxu0 %v565
        %640 = vmatprep.subr.mxu0 0.0
        %641 = vmatpush1.msra.mxu0 %v564
        %642 = vmatprep.subr.mxu0 0.0
        %643 = vmatpush2.msra.mxu0 0.0
        %644 = vmatprep.subr.mxu0 0.0
        %645 = vmatpush2.msra.mxu0 0.0
        %646 = vmatprep.subr.mxu0 0.0
        %647 = vmatpush2.msra.mxu0 0.0
        %648 = vmatprep.subr.mxu0 0.0
        %649 = vmatpush2.msra.mxu0 0.0
        %650 = vmatprep.subr.mxu0 0.0
        %651 = vmatpush2.msra.mxu0 0.0
        %652 = vmatprep.subr.mxu0 0.0
        %653 = vmatpush2.msra.mxu0 0.0
        %654 = vmatprep.subr.mxu0 0.0
        %655 = vmatpush2.msra.mxu0 0.0
        %656 = vmatprep.subr.mxu0 0.0
        %657 = vmatpush2.msra.mxu0 0.0
        %658 = vmatprep.subr.mxu0 0.0
        %659 = vmatpush2.msra.mxu0 0.0
        %660 = vmatprep.subr.mxu0 0.0
        %661 = vmatpush2.msra.mxu0 0.0
        %662 = vmatprep.subr.mxu0 0.0
        %663 = vmatpush2.msra.mxu0 0.0
        %664 = vmatprep.subr.mxu0 0.0
        %665 = vmatpush2.msra.mxu0 0.0
        %666 = vmatprep.subr.mxu0 0.0
        %667 = vmatpush2.msra.mxu0 0.0
        %668 = vmatprep.subr.mxu0 0.0
        %669 = vmatpush2.msra.mxu0 0.0
        %670 = vmatprep.subr.mxu0 0.0
        %671 = vmatpush2.msra.mxu0 0.0
        %672 = vmatprep.subr.mxu0 0.0
        %673 = vmatpush2.msra.mxu0 0.0
        %674 = vmatprep.mubr.f32.mxu0 0.0
        %675 = vmatmul.mubr.f32.gmra.mxu0 %v608
        %v676 = vpop.f32.mrf.mxu0
        %v677 = vadd.f32 %v585, %v676
        %v678 = vpop.f32.mrf.mxu0
        %679 = vdwg.mxu0
        %680 = vst [vmem:[%s220] sm:$0xff] %v677
        %s681 = sand.u32 %s137, 1
        %s682 = scalar_lea.sflag [#allocation3], %s681
        %s683 = sand.u32 %s137, 1
        %s684 = smul.addr %s683, 8
        %s685 = scalar_lea.vmem [#allocation2], %s684
        // Predicated region
        $region41: #{tpu_custom_call.1} parent=39 // pred_check
          %p686 = pneg %p147
        $region42: #{tpu_custom_call.1} parent=39 // pred_check_branch
          %688 = sbr.rel (%p686) target = $region44
        $region43: #{tpu_custom_call.1} parent=39 // pred_region
          %s690 = ssub.s32 128, 128
          %691 = vsyncadd %s682, %s690
          %s692 = smul.addr %s19, 128
          %s693 = scalar_lea.hbm %s5, %s692
          %s695 = sshll.u32 %s685, 4
          %s696 = int_to_ptr.vmem [resolvable:$true] %s695
          %698 = dma.vmem_to_hbm [thread:$0]  %s696, 128, %s693, %s682
        $region44: #{tpu_custom_call.1} parent=39 // pred_fallthru
          _
      $region40: #{tpu_custom_call.1} parent=5 // pred_fallthru
        _
      %p699 = scmp.le.s32.totalorder 2, %s14
      // Predicated region
      $region45: #{tpu_custom_call.1} parent=5 // pred_check
        %p700 = pneg %p699
      $region46: #{tpu_custom_call.1} parent=5 // pred_check_branch
        %702 = sbr.rel (%p700) target = $region48
      $region47: #{tpu_custom_call.1} parent=5 // pred_region
        %s703 = ssub.s32 %s14, 2
        // Predicated region
        $region49: #{tpu_custom_call.1} parent=47 // pred_check
          %p704 = pneg %p153
        $region50: #{tpu_custom_call.1} parent=47 // pred_check_branch
          %706 = sbr.rel (%p704) target = $region52
        $region51: #{tpu_custom_call.1} parent=47 // pred_region
          %s707 = sand.u32 %s138, 1
          %s708 = scalar_lea.sflag [#allocation3], %s707
          %s709 = sand.u32 %s138, 1
          %s710 = smul.addr %s709, 8
          %s711 = scalar_lea.vmem [#allocation2], %s710
          %712 = dma.done %s708, 128
        $region52: #{tpu_custom_call.1} parent=47 // pred_fallthru
          _
      $region48: #{tpu_custom_call.1} parent=5 // pred_fallthru
        _
    $region6: #{tpu_custom_call.1} parent=1 // loop_footer
      %s18 = sadd.s32 1, %s14
    $region7: #{tpu_custom_call.1} parent=1 // loop_footer_branch
      %13 = sbr.rel target = $region3
    $region8: #{tpu_custom_call.1} parent=1 // loop_exit
      _
    %713 = vsyncpa [#allocation3], 1
    %s714 = scalar_lea.sflag [#allocation3], 1
    %715 = vsyncpa %s714, 1

</llo_original>
